<compile_context>
chip_gen: v7x
topology: tpu7x:2x2x1
jax: 0.10.0
libtpu: 0.0.40
codegen_flags: <defaults>
</compile_context>

<pallas_src>
import functools

import jax
import jax.numpy as jnp
from jax.experimental import pallas as pl
from jax.experimental.pallas import tpu as pltpu

_LANE = 128


def _round_up(x, m):
    return (x + m - 1) // m * m


def _fold_lanes(v):
    """(tr, tn) -> (tr, 128) by pairwise-summing 128-lane chunks (VPU only)."""
    n_chunks = v.shape[-1] // _LANE
    chunks = [v[:, k * _LANE:(k + 1) * _LANE] for k in range(n_chunks)]
    while len(chunks) > 1:
        nxt = [chunks[k] + chunks[k + 1] for k in range(0, len(chunks) - 1, 2)]
        if len(chunks) % 2:
            nxt.append(chunks[-1])
        chunks = nxt
    return chunks[0]


def _mlsbce_kernel(yp_ref, yt_ref, out_ref, pos_acc, bce_acc, bcey_acc, *,
                   inv_n, rem):
    """Grid = (row_tiles [parallel], hw_tiles [arbitrary/reduction]).

    rem = N % tn (Python int): 0 means no lane masking is ever needed;
    otherwise only the last spatial tile masks lanes >= rem.
    """
    j = pl.program_id(1)
    last_j = pl.num_programs(1) - 1

    @pl.when(j == 0)
    def _():
        pos_acc[...] = jnp.zeros_like(pos_acc)
        bce_acc[...] = jnp.zeros_like(bce_acc)
        bcey_acc[...] = jnp.zeros_like(bcey_acc)

    # Cast after load: inputs cross HBM in their narrow native dtype.
    x = yp_ref[...].astype(jnp.float32)      # (tr, tn) logits
    y = yt_ref[...].astype(jnp.float32)      # (tr, tn) targets in {0, 1}

    # BCEWithLogitsLoss(reduction='none'), numerically-stable form:
    #   max(x, 0) - x*y + log1p(exp(-|x|))
    bce = jnp.maximum(x, 0.0) - x * y + jnp.log1p(jnp.exp(-jnp.abs(x)))

    def accumulate(y_v, bce_v):
        pos_acc[...] += _fold_lanes(y_v)
        bce_acc[...] += _fold_lanes(bce_v)
        bcey_acc[...] += _fold_lanes(y_v * bce_v)

    if rem == 0:
        accumulate(y, bce)
    else:
        @pl.when(j != last_j)
        def _():
            accumulate(y, bce)

        @pl.when(j == last_j)
        def _():
            # Mask lanes beyond the true spatial extent (Pallas fills the
            # ragged block padding with unspecified data).
            lane_idx = jax.lax.broadcasted_iota(jnp.int32, y.shape, 1)
            valid = lane_idx < rem
            accumulate(jnp.where(valid, y, 0.0), jnp.where(valid, bce, 0.0))

    @pl.when(j == last_j)
    def _():
        # Single cross-lane (XLU) reduce per row tile, deferred to the end.
        pos = jnp.sum(pos_acc[...], axis=-1, keepdims=True)      # (tr, 1)
        sbce = jnp.sum(bce_acc[...], axis=-1, keepdims=True)
        sbcey = jnp.sum(bcey_acc[...], axis=-1, keepdims=True)
        # sum_hw[ y*bce*(1-w) + (1-y)*bce*w ] = (1-2w)*s_bce_y + w*s_bce
        w = pos * inv_n
        out_ref[...] = (1.0 - 2.0 * w) * sbcey + w * sbce


def multilabel_soft_bce(y_pred, y_true):
    """Forward pass of MultiLabelSoftBinaryCrossEntropy (default args).

    y_pred: (b, c, h, w) or (b, c+1, h, w) logits (any float dtype, e.g. bf16)
    y_true: (b, c, h, w) binary targets (bool/int/float)
    Returns a scalar float32 loss.
    """
    if y_pred.shape != y_true.shape:
        # y_pred has one extra leading class channel -> drop it (torch code).
        # TODO(synk): this slice forces one HBM copy of the logits.
        y_pred = y_pred[:, 1:]

    b, c, h, w = y_true.shape
    N = h * w
    rows = b * c

    # Keep native dtypes; only compact integer/bool targets to int8.
    yp = y_pred.reshape(rows, N)
    if jnp.issubdtype(y_true.dtype, jnp.floating):
        yt = y_true.reshape(rows, N)
    else:
        yt = y_true.reshape(rows, N).astype(jnp.int8)

    # --- tile selection ---
    # Row tile: multiple of 32 (int8 sublane packing), capped at 128.
    # Lane tile: multiple of 128, capped at 8192 -> worst-case (f32) block is
    # 4 MiB, so 2 inputs x 2 buffers ~= 16 MiB: fits every generation
    # (including v7x's 64 MiB VMEM) once the scoped limit is raised.
    MAX_TN = 8192
    MAX_TR = 128
    tn = min(_round_up(N, _LANE), MAX_TN)
    tr = min(_round_up(rows, 32), MAX_TR)

    grid = (pl.cdiv(rows, tr), pl.cdiv(N, tn))
    rows_out = grid[0] * tr        # tiny padded output; sliced below

    kernel = functools.partial(_mlsbce_kernel, inv_n=1.0 / N, rem=N % tn)

    partial_rows = pl.pallas_call(
        kernel,
        out_shape=jax.ShapeDtypeStruct((rows_out, 1), jnp.float32),
        grid_spec=pltpu.PrefetchScalarGridSpec(
            num_scalar_prefetch=0,
            grid=grid,
            in_specs=[
                pl.BlockSpec((tr, tn), lambda i, j: (i, j)),
                pl.BlockSpec((tr, tn), lambda i, j: (i, j)),
            ],
            out_specs=pl.BlockSpec((tr, 1), lambda i, j: (i, 0)),
            scratch_shapes=[
                pltpu.VMEM((tr, _LANE), jnp.float32),   # sum(y)      per lane
                pltpu.VMEM((tr, _LANE), jnp.float32),   # sum(bce)    per lane
                pltpu.VMEM((tr, _LANE), jnp.float32),   # sum(y*bce)  per lane
            ],
        ),
        compiler_params=pltpu.CompilerParams(
            dimension_semantics=("parallel", "arbitrary"),
            vmem_limit_bytes=48 * 1024 * 1024,
        ),
    )(yp, yt)

    # Tiny final reduction + normalization in plain JAX.
    return jnp.sum(partial_rows[:rows, 0]) / (b * N)


def _reference(y_pred, y_true):
    # Pure-JAX reference of the same default path.
    if y_pred.shape != y_true.shape:
        y_pred = y_pred[:, 1:]
    b, c, h, w = y_true.shape
    N = h * w
    x = y_pred.astype(jnp.float32)
    y = y_true.astype(jnp.float32)
    bce = jnp.maximum(x, 0.0) - x * y + jnp.log1p(jnp.exp(-jnp.abs(x)))
    weights = jnp.sum(y, axis=(2, 3), keepdims=True) / N
    betas = 1.0 - weights
    loss = y * bce * betas + (1.0 - y) * bce * weights
    return jnp.sum(loss) / (b * N)


def _check(y_pred, y_true):
    loss = jax.block_until_ready(multilabel_soft_bce(y_pred, y_true))
    ref = _reference(y_pred, y_true)
    assert jnp.allclose(loss, ref, rtol=1e-5, atol=1e-5), (loss, ref)


if __name__ == "__main__":
    key = jax.random.PRNGKey(0)
    k1, k2, k3, k4, k5, k6, k7, k8 = jax.random.split(key, 8)

    # Case 1: bf16 logits + int8 targets (bandwidth-optimal path), tiny shape.
    b, c, h, w = 2, 4, 16, 16
    yp1 = jax.random.normal(k1, (b, c, h, w), dtype=jnp.float32).astype(
        jnp.bfloat16)
    yt1 = (jax.random.uniform(k2, (b, c, h, w)) > 0.5).astype(jnp.int8)
    _check(yp1, yt1)

    # Case 2: f32 logits with extra background channel, f32 targets, odd
    # spatial size (exercises channel-drop + ragged-lane masking + row-ragged
    # block handling without any wrapper-side padding).
    b2, c2, h2, w2 = 2, 3, 17, 13
    yp2 = jax.random.normal(k3, (b2, c2 + 1, h2, w2), dtype=jnp.float32)
    yt2 = (jax.random.uniform(k4, (b2, c2, h2, w2)) > 0.5).astype(jnp.float32)
    _check(yp2, yt2)

    # Case 3: multiple spatial tiles with a ragged last tile (N > 8192).
    b3, c3, h3, w3 = 2, 12, 96, 96
    yp3 = jax.random.normal(k5, (b3, c3, h3, w3), dtype=jnp.float32).astype(
        jnp.bfloat16)
    yt3 = (jax.random.uniform(k6, (b3, c3, h3, w3)) > 0.8).astype(jnp.int8)
    _check(yp3, yt3)

    # Case 4: multiple row tiles with a ragged last row tile (b*c > 128).
    b4, c4, h4, w4 = 2, 80, 16, 16
    yp4 = jax.random.normal(k7, (b4, c4, h4, w4), dtype=jnp.float32)
    yt4 = (jax.random.uniform(k8, (b4, c4, h4, w4)) > 0.5).astype(jnp.float32)
    _check(yp4, yt4)

    print("KERNEL_OK")
</pallas_src>

<mosaic_0001>
module attributes {stable_mosaic.version = 11 : i64} {
  func.func @_mlsbce_kernel(%arg0: i32, %arg1: i32, %arg2: memref<32x256xbf16, #tpu.memory_space<vmem>>, %arg3: memref<32x256xi8, #tpu.memory_space<vmem>>, %arg4: memref<32x1xf32, #tpu.memory_space<vmem>>, %arg5: memref<32x128xf32, #tpu.memory_space<vmem>>, %arg6: memref<32x128xf32, #tpu.memory_space<vmem>>, %arg7: memref<32x128xf32, #tpu.memory_space<vmem>>) attributes {dimension_semantics = [#tpu.dimension_semantics<parallel>, #tpu.dimension_semantics<arbitrary>], iteration_bounds = array<i64: 1, 1>, scalar_prefetch = 0 : i64, scratch_operands = 3 : i64, tpu.core_type = #tpu.core_type<tc>, window_params = [{transform_indices = @transform_0, window_bounds = array<i64: 32, 256>}, {transform_indices = @transform_1, window_bounds = array<i64: 32, 256>}, {transform_indices = @transform_2, window_bounds = array<i64: 32, 1>}]} {
    %c0_i32 = arith.constant 0 : i32
    %0 = arith.cmpi eq, %arg1, %c0_i32 : i32
    %1 = arith.extui %0 : i1 to i32
    %c0_i32_0 = arith.constant 0 : i32
    %2 = arith.cmpi ne, %1, %c0_i32_0 : i32
    scf.if %2 {
      %cst_19 = arith.constant 0.000000e+00 : f32
      %39 = vector.broadcast %cst_19 : f32 to vector<32x128xf32>
      %c0_20 = arith.constant 0 : index
      %c0_21 = arith.constant 0 : index
      %40 = vector.load %arg5[%c0_20, %c0_21] : memref<32x128xf32, #tpu.memory_space<vmem>>, vector<32x128xf32>
      tpu.vector_store %arg5[%c0_20, %c0_21], %39 {strides = array<i32>} : memref<32x128xf32, #tpu.memory_space<vmem>>, vector<32x128xf32>,
      %cst_22 = arith.constant 0.000000e+00 : f32
      %41 = vector.broadcast %cst_22 : f32 to vector<32x128xf32>
      %c0_23 = arith.constant 0 : index
      %c0_24 = arith.constant 0 : index
      %42 = vector.load %arg6[%c0_23, %c0_24] : memref<32x128xf32, #tpu.memory_space<vmem>>, vector<32x128xf32>
      tpu.vector_store %arg6[%c0_23, %c0_24], %41 {strides = array<i32>} : memref<32x128xf32, #tpu.memory_space<vmem>>, vector<32x128xf32>,
      %cst_25 = arith.constant 0.000000e+00 : f32
      %43 = vector.broadcast %cst_25 : f32 to vector<32x128xf32>
      %c0_26 = arith.constant 0 : index
      %c0_27 = arith.constant 0 : index
      %44 = vector.load %arg7[%c0_26, %c0_27] : memref<32x128xf32, #tpu.memory_space<vmem>>, vector<32x128xf32>
      tpu.vector_store %arg7[%c0_26, %c0_27], %43 {strides = array<i32>} : memref<32x128xf32, #tpu.memory_space<vmem>>, vector<32x128xf32>,
    } else {
    }
    %c0 = arith.constant 0 : index
    %c0_1 = arith.constant 0 : index
    %3 = vector.load %arg2[%c0, %c0_1] : memref<32x256xbf16, #tpu.memory_space<vmem>>, vector<32x256xbf16>
    %4 = arith.extf %3 : vector<32x256xbf16> to vector<32x256xf32>
    %c0_2 = arith.constant 0 : index
    %c0_3 = arith.constant 0 : index
    %5 = vector.load %arg3[%c0_2, %c0_3] : memref<32x256xi8, #tpu.memory_space<vmem>>, vector<32x256xi8>
    %6 = arith.sitofp %5 : vector<32x256xi8> to vector<32x256xf32>
    %cst = arith.constant 0.000000e+00 : f32
    %7 = vector.broadcast %cst : f32 to vector<32x256xf32>
    %8 = arith.maximumf %4, %7 : vector<32x256xf32>
    %9 = arith.mulf %4, %6 : vector<32x256xf32>
    %10 = arith.subf %8, %9 : vector<32x256xf32>
    %11 = math.absf %4 : vector<32x256xf32>
    %cst_4 = arith.constant 0.000000e+00 : f32
    %12 = vector.broadcast %cst_4 : f32 to vector<32x256xf32>
    %13 = arith.subf %12, %11 : vector<32x256xf32>
    %14 = math.exp %13 : vector<32x256xf32>
    %15 = math.log1p %14 : vector<32x256xf32>
    %16 = arith.addf %10, %15 : vector<32x256xf32>
    %c0_5 = arith.constant 0 : index
    %c0_6 = arith.constant 0 : index
    %17 = vector.load %arg5[%c0_5, %c0_6] : memref<32x128xf32, #tpu.memory_space<vmem>>, vector<32x128xf32>
    %18 = vector.extract_strided_slice %6 {offsets = [0, 0], sizes = [32, 128], strides = [1, 1]} : vector<32x256xf32> to vector<32x128xf32>
    %19 = vector.extract_strided_slice %6 {offsets = [0, 128], sizes = [32, 128], strides = [1, 1]} : vector<32x256xf32> to vector<32x128xf32>
    %20 = arith.addf %18, %19 : vector<32x128xf32>
    %21 = arith.addf %17, %20 : vector<32x128xf32>
    %c0_7 = arith.constant 0 : index
    %c0_8 = arith.constant 0 : index
    %22 = vector.load %arg5[%c0_7, %c0_8] : memref<32x128xf32, #tpu.memory_space<vmem>>, vector<32x128xf32>
    tpu.vector_store %arg5[%c0_7, %c0_8], %21 {strides = array<i32>} : memref<32x128xf32, #tpu.memory_space<vmem>>, vector<32x128xf32>,
    %c0_9 = arith.constant 0 : index
    %c0_10 = arith.constant 0 : index
    %23 = vector.load %arg6[%c0_9, %c0_10] : memref<32x128xf32, #tpu.memory_space<vmem>>, vector<32x128xf32>
    %24 = vector.extract_strided_slice %16 {offsets = [0, 0], sizes = [32, 128], strides = [1, 1]} : vector<32x256xf32> to vector<32x128xf32>
    %25 = vector.extract_strided_slice %16 {offsets = [0, 128], sizes = [32, 128], strides = [1, 1]} : vector<32x256xf32> to vector<32x128xf32>
    %26 = arith.addf %24, %25 : vector<32x128xf32>
    %27 = arith.addf %23, %26 : vector<32x128xf32>
    %c0_11 = arith.constant 0 : index
    %c0_12 = arith.constant 0 : index
    %28 = vector.load %arg6[%c0_11, %c0_12] : memref<32x128xf32, #tpu.memory_space<vmem>>, vector<32x128xf32>
    tpu.vector_store %arg6[%c0_11, %c0_12], %27 {strides = array<i32>} : memref<32x128xf32, #tpu.memory_space<vmem>>, vector<32x128xf32>,
    %c0_13 = arith.constant 0 : index
    %c0_14 = arith.constant 0 : index
    %29 = vector.load %arg7[%c0_13, %c0_14] : memref<32x128xf32, #tpu.memory_space<vmem>>, vector<32x128xf32>
    %30 = arith.mulf %6, %16 : vector<32x256xf32>
    %31 = vector.extract_strided_slice %30 {offsets = [0, 0], sizes = [32, 128], strides = [1, 1]} : vector<32x256xf32> to vector<32x128xf32>
    %32 = vector.extract_strided_slice %30 {offsets = [0, 128], sizes = [32, 128], strides = [1, 1]} : vector<32x256xf32> to vector<32x128xf32>
    %33 = arith.addf %31, %32 : vector<32x128xf32>
    %34 = arith.addf %29, %33 : vector<32x128xf32>
    %c0_15 = arith.constant 0 : index
    %c0_16 = arith.constant 0 : index
    %35 = vector.load %arg7[%c0_15, %c0_16] : memref<32x128xf32, #tpu.memory_space<vmem>>, vector<32x128xf32>
    tpu.vector_store %arg7[%c0_15, %c0_16], %34 {strides = array<i32>} : memref<32x128xf32, #tpu.memory_space<vmem>>, vector<32x128xf32>,
    %c0_i32_17 = arith.constant 0 : i32
    %36 = arith.cmpi eq, %arg1, %c0_i32_17 : i32
    %37 = arith.extui %36 : i1 to i32
    %c0_i32_18 = arith.constant 0 : i32
    %38 = arith.cmpi ne, %37, %c0_i32_18 : i32
    scf.if %38 {
      %c0_19 = arith.constant 0 : index
      %c0_20 = arith.constant 0 : index
      %39 = vector.load %arg5[%c0_19, %c0_20] : memref<32x128xf32, #tpu.memory_space<vmem>>, vector<32x128xf32>
      %cst_21 = arith.constant dense<0.000000e+00> : vector<32xf32>
      %40 = vector.multi_reduction <add>, %39, %cst_21 [1] : vector<32x128xf32> to vector<32xf32>
      %41 = vector.shape_cast %40 : vector<32xf32> to vector<32x1xf32>
      %c0_22 = arith.constant 0 : index
      %c0_23 = arith.constant 0 : index
      %42 = vector.load %arg6[%c0_22, %c0_23] : memref<32x128xf32, #tpu.memory_space<vmem>>, vector<32x128xf32>
      %cst_24 = arith.constant dense<0.000000e+00> : vector<32xf32>
      %43 = vector.multi_reduction <add>, %42, %cst_24 [1] : vector<32x128xf32> to vector<32xf32>
      %44 = vector.shape_cast %43 : vector<32xf32> to vector<32x1xf32>
      %c0_25 = arith.constant 0 : index
      %c0_26 = arith.constant 0 : index
      %45 = vector.load %arg7[%c0_25, %c0_26] : memref<32x128xf32, #tpu.memory_space<vmem>>, vector<32x128xf32>
      %cst_27 = arith.constant dense<0.000000e+00> : vector<32xf32>
      %46 = vector.multi_reduction <add>, %45, %cst_27 [1] : vector<32x128xf32> to vector<32xf32>
      %47 = vector.shape_cast %46 : vector<32xf32> to vector<32x1xf32>
      %cst_28 = arith.constant 3.906250e-03 : f32
      %48 = vector.broadcast %cst_28 : f32 to vector<32x1xf32>
      %49 = arith.mulf %41, %48 : vector<32x1xf32>
      %cst_29 = arith.constant 2.000000e+00 : f32
      %50 = vector.broadcast %cst_29 : f32 to vector<32x1xf32>
      %51 = arith.mulf %50, %49 : vector<32x1xf32>
      %cst_30 = arith.constant 1.000000e+00 : f32
      %52 = vector.broadcast %cst_30 : f32 to vector<32x1xf32>
      %53 = arith.subf %52, %51 : vector<32x1xf32>
      %54 = arith.mulf %53, %47 : vector<32x1xf32>
      %55 = arith.mulf %49, %44 : vector<32x1xf32>
      %56 = arith.addf %54, %55 : vector<32x1xf32>
      %c0_31 = arith.constant 0 : index
      %c0_32 = arith.constant 0 : index
      %57 = vector.load %arg4[%c0_31, %c0_32] : memref<32x1xf32, #tpu.memory_space<vmem>>, vector<32x1xf32>
      tpu.vector_store %arg4[%c0_31, %c0_32], %56 {strides = array<i32>} : memref<32x1xf32, #tpu.memory_space<vmem>>, vector<32x1xf32>,
    } else {
    }
    return
  }
  func.func @transform_0(%arg0: i32, %arg1: i32) -> (i32, i32) {
    %c0_i32 = arith.constant 0 : i32
    return %arg0, %arg1 : i32, i32
  }
  func.func @transform_1(%arg0: i32, %arg1: i32) -> (i32, i32) {
    %c0_i32 = arith.constant 0 : i32
    return %arg0, %arg1 : i32, i32
  }
  func.func @transform_2(%arg0: i32, %arg1: i32) -> (i32, i32) {
    %c0_i32 = arith.constant 0 : i32
    %c0_i32_0 = arith.constant 0 : i32
    return %arg0, %c0_i32 : i32, i32
  }
}

</mosaic_0001>

<llo_original>
// kernel: tpu_custom_call.1
$region0: #{tpu_custom_call.1}
  #allocation0 [shape = 'u32[]', space=smem, size = 0x4, offset = 0x4, fixed_abs, tag = 'smem constant byte address 0x4 - core index']
  #allocation1 [shape = 'u32[144,128]{1,0:T(1,128)}', space=vmem, size = 0x12000, scoped, tag = 'internal scratch']
  #allocation2 [shape = 'f32[32,128]{1,0:T(8,128)}', space=vmem, size = 0x4000, scoped, tag = 'scratch operand']
  #allocation3 [shape = 'f32[32,128]{1,0:T(8,128)}', space=vmem, size = 0x4000, scoped, tag = 'scratch operand']
  #allocation4 [shape = 'f32[32,128]{1,0:T(8,128)}', space=vmem, size = 0x4000, scoped, tag = 'scratch operand']
  %s0 = inlined_call_operand.hbm [shape: bf16[8,256], index: 0, kind: input, shape index: {}]
  %s1 = inlined_call_operand.hbm [shape: s8[8,256], index: 1, kind: input, shape index: {}]
  %s2 = inlined_call_operand.vmem [shape: f32[32,1], index: 2, kind: output, shape index: {}]
  %s3 = sld [smem:[#allocation0]]
  $region34: #{tpu_custom_call.1} parent=0
    _
  %s5 = ssub.s32 1, %s3
  %s6 = scalar_select 0, %s5, %s3
  $region1: #{tpu_custom_call.1} parent=0
    #allocation5 [shape = 'u8[16384]{0}', space=vmem, size = 0x4000, scoped, tag = 'input window, operand 0, single buffered']
    #allocation6 [shape = 's32[1]{0}', space=sflag, size = 0x4, scoped, tag = 'scoped memory for tpu_custom_call.1']
    #allocation7 [shape = 'u8[8192]{0}', space=vmem, size = 0x2000, scoped, tag = 'input window, operand 1, single buffered']
    #allocation8 [shape = 's32[1]{0}', space=sflag, size = 0x4, scoped, tag = 'scoped memory for tpu_custom_call.1']
    %7 = vsyncpa [#allocation6], 0
    %8 = vsyncpa [#allocation8], 0
    // Predicated region
    $region2: #{tpu_custom_call.1} parent=1 // pred_check
      _
    $region3: #{tpu_custom_call.1} parent=1 // pred_check_branch
      %10 = sbr.rel (0) target = $region5
    $region4: #{tpu_custom_call.1} parent=1 // pred_region
      %s12 = ssub.s32 512, 128
      %13 = vsyncadd [#allocation6], %s12
      %s14 = sshll.u32 [#allocation5], 4
      %s15 = int_to_ptr.vmem [resolvable:$true] %s14
      %20 = dma.hbm_to_vmem [thread:$0]  %s0, 128, %s15, [#allocation6], 128, 128, 8
    $region5: #{tpu_custom_call.1} parent=1 // pred_fallthru
      _
    // Predicated region
    $region6: #{tpu_custom_call.1} parent=1 // pred_check
      _
    $region7: #{tpu_custom_call.1} parent=1 // pred_check_branch
      %22 = sbr.rel (0) target = $region9
    $region8: #{tpu_custom_call.1} parent=1 // pred_region
      %s24 = ssub.s32 256, 64
      %25 = vsyncadd [#allocation8], %s24
      %s26 = sshll.u32 [#allocation7], 4
      %s27 = int_to_ptr.vmem [resolvable:$true] %s26
      %32 = dma.hbm_to_vmem [thread:$0]  %s1, 64, %s27, [#allocation8], 64, 64, 4
    $region9: #{tpu_custom_call.1} parent=1 // pred_fallthru
      _
    // Predicated region
    $region10: #{tpu_custom_call.1} parent=1 // pred_check
      _
    $region11: #{tpu_custom_call.1} parent=1 // pred_check_branch
      %34 = sbr.rel (0) target = $region13
    $region12: #{tpu_custom_call.1} parent=1 // pred_region
      %35 = dma.done [#allocation6], 512
    $region13: #{tpu_custom_call.1} parent=1 // pred_fallthru
      _
    // Predicated region
    $region14: #{tpu_custom_call.1} parent=1 // pred_check
      _
    $region15: #{tpu_custom_call.1} parent=1 // pred_check_branch
      %37 = sbr.rel (0) target = $region17
    $region16: #{tpu_custom_call.1} parent=1 // pred_region
      %38 = dma.done [#allocation8], 256
    $region17: #{tpu_custom_call.1} parent=1 // pred_fallthru
      _
    %p39 = scmp.eq.s32.totalorder 0, 0
    // Predicated region
    $region18: #{tpu_custom_call.1} parent=1 // pred_check
      %p40 = pneg %p39
    $region19: #{tpu_custom_call.1} parent=1 // pred_check_branch
      %42 = sbr.rel (%p40) target = $region21
    $region20: #{tpu_custom_call.1} parent=1 // pred_region
      %43 = vst [vmem:[#allocation2] sm:$0xff] 0.0
      %44 = vst [vmem:[#allocation2 + $0x8] sm:$0xff] 0.0
      %45 = vst [vmem:[#allocation2 + $0x10] sm:$0xff] 0.0
      %46 = vst [vmem:[#allocation2 + $0x18] sm:$0xff] 0.0
      %47 = vst [vmem:[#allocation3] sm:$0xff] 0.0
      %48 = vst [vmem:[#allocation3 + $0x8] sm:$0xff] 0.0
      %49 = vst [vmem:[#allocation3 + $0x10] sm:$0xff] 0.0
      %50 = vst [vmem:[#allocation3 + $0x18] sm:$0xff] 0.0
      %51 = vst [vmem:[#allocation4] sm:$0xff] 0.0
      %52 = vst [vmem:[#allocation4 + $0x8] sm:$0xff] 0.0
      %53 = vst [vmem:[#allocation4 + $0x10] sm:$0xff] 0.0
      %54 = vst [vmem:[#allocation4 + $0x18] sm:$0xff] 0.0
    $region21: #{tpu_custom_call.1} parent=1 // pred_fallthru
      _
    %v55 = vld [vmem:[#allocation5] sm:$0xff]
    %v56 = vld [vmem:[#allocation5 + $0x8] sm:$0xff]
    %v57 = vld [vmem:[#allocation5 + $0x10] sm:$0xff]
    %v58 = vld [vmem:[#allocation5 + $0x18] sm:$0xff]
    %v59 = vunpack.c.l.bf16 %v55
    %v60 = vunpack.c.h.bf16 %v55
    %v61 = vunpack.c.l.bf16 %v56
    %v62 = vunpack.c.h.bf16 %v56
    %v63 = vunpack.c.l.bf16 %v57
    %v64 = vunpack.c.h.bf16 %v57
    %v65 = vunpack.c.l.bf16 %v58
    %v66 = vunpack.c.h.bf16 %v58
    %v67 = vld [vmem:[#allocation7] sm:$0xf]
    %v68 = vld [vmem:[#allocation7 + $0x4] sm:$0xf]
    %v69 = vld [vmem:[#allocation7 + $0x8] sm:$0xf]
    %v70 = vld [vmem:[#allocation7 + $0xc] sm:$0xf]
    %v71 = vunpack.c.0.s8 %v67
    %v72 = vunpack.c.1.s8 %v67
    %v73 = vunpack.c.0.s8 %v68
    %v74 = vunpack.c.1.s8 %v68
    %v75 = vunpack.c.0.s8 %v69
    %v76 = vunpack.c.1.s8 %v69
    %v77 = vunpack.c.0.s8 %v70
    %v78 = vunpack.c.1.s8 %v70
    %v79 = vcvt.s32.f32 %v71
    %v80 = vcvt.s32.f32 %v72
    %v81 = vcvt.s32.f32 %v73
    %v82 = vcvt.s32.f32 %v74
    %v83 = vcvt.s32.f32 %v75
    %v84 = vcvt.s32.f32 %v76
    %v85 = vcvt.s32.f32 %v77
    %v86 = vcvt.s32.f32 %v78
    %v87 = vmax.f32 %v59, 0.0
    %v88 = vmax.f32 %v60, 0.0
    %v89 = vmax.f32 %v61, 0.0
    %v90 = vmax.f32 %v62, 0.0
    %v91 = vmax.f32 %v63, 0.0
    %v92 = vmax.f32 %v64, 0.0
    %v93 = vmax.f32 %v65, 0.0
    %v94 = vmax.f32 %v66, 0.0
    %v95 = vmul.f32 %v59, %v79
    %v96 = vmul.f32 %v60, %v80
    %v97 = vmul.f32 %v61, %v81
    %v98 = vmul.f32 %v62, %v82
    %v99 = vmul.f32 %v63, %v83
    %v100 = vmul.f32 %v64, %v84
    %v101 = vmul.f32 %v65, %v85
    %v102 = vmul.f32 %v66, %v86
    %v103 = vsub.f32 %v87, %v95
    %v104 = vsub.f32 %v88, %v96
    %v105 = vsub.f32 %v89, %v97
    %v106 = vsub.f32 %v90, %v98
    %v107 = vsub.f32 %v91, %v99
    %v108 = vsub.f32 %v92, %v100
    %v109 = vsub.f32 %v93, %v101
    %v110 = vsub.f32 %v94, %v102
    %v111 = vand.u32 2147483647, %v59
    %v112 = vand.u32 2147483647, %v60
    %v113 = vand.u32 2147483647, %v61
    %v114 = vand.u32 2147483647, %v62
    %v115 = vand.u32 2147483647, %v63
    %v116 = vand.u32 2147483647, %v64
    %v117 = vand.u32 2147483647, %v65
    %v118 = vand.u32 2147483647, %v66
    %v119 = vsub.f32 0.0, %v111
    %v120 = vsub.f32 0.0, %v112
    %v121 = vsub.f32 0.0, %v113
    %v122 = vsub.f32 0.0, %v114
    %v123 = vsub.f32 0.0, %v115
    %v124 = vsub.f32 0.0, %v116
    %v125 = vsub.f32 0.0, %v117
    %v126 = vsub.f32 0.0, %v118
    %v127 = vmul.f32 %v119, 1.442695
    %v128 = vpow.pop %v127
    %v129 = vmul.f32 %v120, 1.442695
    %v130 = vpow.pop %v129
    %v131 = vmul.f32 %v121, 1.442695
    %v132 = vpow.pop %v131
    %v133 = vmul.f32 %v122, 1.442695
    %v134 = vpow.pop %v133
    %v135 = vmul.f32 %v123, 1.442695
    %v136 = vpow.pop %v135
    %v137 = vmul.f32 %v124, 1.442695
    %v138 = vpow.pop %v137
    %v139 = vmul.f32 %v125, 1.442695
    %v140 = vpow.pop %v139
    %v141 = vmul.f32 %v126, 1.442695
    %v142 = vpow.pop %v141
    %v143 = vadd.f32 %v128, 1.0
    %v144 = vlog2.pop %v143
    %v145 = vmul.f32 %v144, 0.6931472
    %v146 = vmul.f32 -0.5, %v128
    %v147 = vadd.f32 %v146, 1.0
    %v148 = vmul.f32 %v147, %v128
    %v149 = vand.u32 2147483647, %v128
    %vm150 = vcmp.lt.f32.partialorder %v149, 0.0004427343
    %v151 = vsel %vm150, %v148, %v145
    %v152 = vadd.f32 %v130, 1.0
    %v153 = vlog2.pop %v152
    %v154 = vmul.f32 %v153, 0.6931472
    %v155 = vmul.f32 -0.5, %v130
    %v156 = vadd.f32 %v155, 1.0
    %v157 = vmul.f32 %v156, %v130
    %v158 = vand.u32 2147483647, %v130
    %vm159 = vcmp.lt.f32.partialorder %v158, 0.0004427343
    %v160 = vsel %vm159, %v157, %v154
    %v161 = vadd.f32 %v132, 1.0
    %v162 = vlog2.pop %v161
    %v163 = vmul.f32 %v162, 0.6931472
    %v164 = vmul.f32 -0.5, %v132
    %v165 = vadd.f32 %v164, 1.0
    %v166 = vmul.f32 %v165, %v132
    %v167 = vand.u32 2147483647, %v132
    %vm168 = vcmp.lt.f32.partialorder %v167, 0.0004427343
    %v169 = vsel %vm168, %v166, %v163
    %v170 = vadd.f32 %v134, 1.0
    %v171 = vlog2.pop %v170
    %v172 = vmul.f32 %v171, 0.6931472
    %v173 = vmul.f32 -0.5, %v134
    %v174 = vadd.f32 %v173, 1.0
    %v175 = vmul.f32 %v174, %v134
    %v176 = vand.u32 2147483647, %v134
    %vm177 = vcmp.lt.f32.partialorder %v176, 0.0004427343
    %v178 = vsel %vm177, %v175, %v172
    %v179 = vadd.f32 %v136, 1.0
    %v180 = vlog2.pop %v179
    %v181 = vmul.f32 %v180, 0.6931472
    %v182 = vmul.f32 -0.5, %v136
    %v183 = vadd.f32 %v182, 1.0
    %v184 = vmul.f32 %v183, %v136
    %v185 = vand.u32 2147483647, %v136
    %vm186 = vcmp.lt.f32.partialorder %v185, 0.0004427343
    %v187 = vsel %vm186, %v184, %v181
    %v188 = vadd.f32 %v138, 1.0
    %v189 = vlog2.pop %v188
    %v190 = vmul.f32 %v189, 0.6931472
    %v191 = vmul.f32 -0.5, %v138
    %v192 = vadd.f32 %v191, 1.0
    %v193 = vmul.f32 %v192, %v138
    %v194 = vand.u32 2147483647, %v138
    %vm195 = vcmp.lt.f32.partialorder %v194, 0.0004427343
    %v196 = vsel %vm195, %v193, %v190
    %v197 = vadd.f32 %v140, 1.0
    %v198 = vlog2.pop %v197
    %v199 = vmul.f32 %v198, 0.6931472
    %v200 = vmul.f32 -0.5, %v140
    %v201 = vadd.f32 %v200, 1.0
    %v202 = vmul.f32 %v201, %v140
    %v203 = vand.u32 2147483647, %v140
    %vm204 = vcmp.lt.f32.partialorder %v203, 0.0004427343
    %v205 = vsel %vm204, %v202, %v199
    %v206 = vadd.f32 %v142, 1.0
    %v207 = vlog2.pop %v206
    %v208 = vmul.f32 %v207, 0.6931472
    %v209 = vmul.f32 -0.5, %v142
    %v210 = vadd.f32 %v209, 1.0
    %v211 = vmul.f32 %v210, %v142
    %v212 = vand.u32 2147483647, %v142
    %vm213 = vcmp.lt.f32.partialorder %v212, 0.0004427343
    %v214 = vsel %vm213, %v211, %v208
    %v215 = vadd.f32 %v103, %v151
    %v216 = vadd.f32 %v104, %v160
    %v217 = vadd.f32 %v105, %v169
    %v218 = vadd.f32 %v106, %v178
    %v219 = vadd.f32 %v107, %v187
    %v220 = vadd.f32 %v108, %v196
    %v221 = vadd.f32 %v109, %v205
    %v222 = vadd.f32 %v110, %v214
    %v223 = vld [vmem:[#allocation2] sm:$0xff]
    %v224 = vld [vmem:[#allocation2 + $0x8] sm:$0xff]
    %v225 = vld [vmem:[#allocation2 + $0x10] sm:$0xff]
    %v226 = vld [vmem:[#allocation2 + $0x18] sm:$0xff]
    %v227 = vadd.f32 %v79, %v80
    %v228 = vadd.f32 %v81, %v82
    %v229 = vadd.f32 %v83, %v84
    %v230 = vadd.f32 %v85, %v86
    %v231 = vadd.f32 %v223, %v227
    %v232 = vadd.f32 %v224, %v228
    %v233 = vadd.f32 %v225, %v229
    %v234 = vadd.f32 %v226, %v230
    %235 = vst [vmem:[#allocation2] sm:$0xff] %v231
    %236 = vst [vmem:[#allocation2 + $0x8] sm:$0xff] %v232
    %237 = vst [vmem:[#allocation2 + $0x10] sm:$0xff] %v233
    %238 = vst [vmem:[#allocation2 + $0x18] sm:$0xff] %v234
    %v239 = vld [vmem:[#allocation3] sm:$0xff]
    %v240 = vld [vmem:[#allocation3 + $0x8] sm:$0xff]
    %v241 = vld [vmem:[#allocation3 + $0x10] sm:$0xff]
    %v242 = vld [vmem:[#allocation3 + $0x18] sm:$0xff]
    %v243 = vadd.f32 %v215, %v216
    %v244 = vadd.f32 %v217, %v218
    %v245 = vadd.f32 %v219, %v220
    %v246 = vadd.f32 %v221, %v222
    %v247 = vadd.f32 %v239, %v243
    %v248 = vadd.f32 %v240, %v244
    %v249 = vadd.f32 %v241, %v245
    %v250 = vadd.f32 %v242, %v246
    %251 = vst [vmem:[#allocation3] sm:$0xff] %v247
    %252 = vst [vmem:[#allocation3 + $0x8] sm:$0xff] %v248
    %253 = vst [vmem:[#allocation3 + $0x10] sm:$0xff] %v249
    %254 = vst [vmem:[#allocation3 + $0x18] sm:$0xff] %v250
    %v255 = vld [vmem:[#allocation4] sm:$0xff]
    %v256 = vld [vmem:[#allocation4 + $0x8] sm:$0xff]
    %v257 = vld [vmem:[#allocation4 + $0x10] sm:$0xff]
    %v258 = vld [vmem:[#allocation4 + $0x18] sm:$0xff]
    %v259 = vmul.f32 %v79, %v215
    %v260 = vmul.f32 %v80, %v216
    %v261 = vmul.f32 %v81, %v217
    %v262 = vmul.f32 %v82, %v218
    %v263 = vmul.f32 %v83, %v219
    %v264 = vmul.f32 %v84, %v220
    %v265 = vmul.f32 %v85, %v221
    %v266 = vmul.f32 %v86, %v222
    %v267 = vadd.f32 %v259, %v260
    %v268 = vadd.f32 %v261, %v262
    %v269 = vadd.f32 %v263, %v264
    %v270 = vadd.f32 %v265, %v266
    %v271 = vadd.f32 %v255, %v267
    %v272 = vadd.f32 %v256, %v268
    %v273 = vadd.f32 %v257, %v269
    %v274 = vadd.f32 %v258, %v270
    %275 = vst [vmem:[#allocation4] sm:$0xff] %v271
    %276 = vst [vmem:[#allocation4 + $0x8] sm:$0xff] %v272
    %277 = vst [vmem:[#allocation4 + $0x10] sm:$0xff] %v273
    %278 = vst [vmem:[#allocation4 + $0x18] sm:$0xff] %v274
    // Predicated region
    $region22: #{tpu_custom_call.1} parent=1 // pred_check
      %p279 = pneg %p39
    $region23: #{tpu_custom_call.1} parent=1 // pred_check_branch
      %281 = sbr.rel (%p279) target = $region25
    $region24: #{tpu_custom_call.1} parent=1 // pred_region
      %v282 = vld [vmem:[#allocation2] sm:$0xff]
      %v283 = vld [vmem:[#allocation2 + $0x8] sm:$0xff]
      %v284 = vld [vmem:[#allocation2 + $0x10] sm:$0xff]
      %v285 = vld [vmem:[#allocation2 + $0x18] sm:$0xff]
      %286 = vadd.xlane.f32.xlu0 %v282
      %v287 = vpop.xlane.xlu0 %286
      %288 = vadd.xlane.f32.xlu0 %v283
      %v289 = vpop.xlane.xlu0 %288
      %290 = vadd.xlane.f32.xlu0 %v284
      %v291 = vpop.xlane.xlu0 %290
      %292 = vadd.xlane.f32.xlu0 %v285
      %v293 = vpop.xlane.xlu0 %292
      %v294 = vld [vmem:[#allocation3] sm:$0xff]
      %v295 = vld [vmem:[#allocation3 + $0x8] sm:$0xff]
      %v296 = vld [vmem:[#allocation3 + $0x10] sm:$0xff]
      %v297 = vld [vmem:[#allocation3 + $0x18] sm:$0xff]
      %298 = vadd.xlane.f32.xlu0 %v294
      %v299 = vpop.xlane.xlu0 %298
      %300 = vadd.xlane.f32.xlu0 %v295
      %v301 = vpop.xlane.xlu0 %300
      %302 = vadd.xlane.f32.xlu0 %v296
      %v303 = vpop.xlane.xlu0 %302
      %304 = vadd.xlane.f32.xlu0 %v297
      %v305 = vpop.xlane.xlu0 %304
      %v306 = vld [vmem:[#allocation4] sm:$0xff]
      %v307 = vld [vmem:[#allocation4 + $0x8] sm:$0xff]
      %v308 = vld [vmem:[#allocation4 + $0x10] sm:$0xff]
      %v309 = vld [vmem:[#allocation4 + $0x18] sm:$0xff]
      %310 = vadd.xlane.f32.xlu0 %v306
      %v311 = vpop.xlane.xlu0 %310
      %312 = vadd.xlane.f32.xlu0 %v307
      %v313 = vpop.xlane.xlu0 %312
      %314 = vadd.xlane.f32.xlu0 %v308
      %v315 = vpop.xlane.xlu0 %314
      %316 = vadd.xlane.f32.xlu0 %v309
      %v317 = vpop.xlane.xlu0 %316
      %v318 = vmul.f32 %v287, 0.00390625
      %v319 = vmul.f32 %v289, 0.00390625
      %v320 = vmul.f32 %v291, 0.00390625
      %v321 = vmul.f32 %v293, 0.00390625
      %v322 = vmul.f32 %v318, 2.0
      %v323 = vmul.f32 %v319, 2.0
      %v324 = vmul.f32 %v320, 2.0
      %v325 = vmul.f32 %v321, 2.0
      %v326 = vsub.f32 1.0, %v322
      %v327 = vsub.f32 1.0, %v323
      %v328 = vsub.f32 1.0, %v324
      %v329 = vsub.f32 1.0, %v325
      %v330 = vmul.f32 %v326, %v311
      %v331 = vmul.f32 %v327, %v313
      %v332 = vmul.f32 %v328, %v315
      %v333 = vmul.f32 %v329, %v317
      %v334 = vmul.f32 %v318, %v299
      %v335 = vmul.f32 %v319, %v301
      %v336 = vmul.f32 %v320, %v303
      %v337 = vmul.f32 %v321, %v305
      %v338 = vadd.f32 %v330, %v334
      %v339 = vadd.f32 %v331, %v335
      %v340 = vadd.f32 %v332, %v336
      %v341 = vadd.f32 %v333, %v337
      %vm342 = vcmask 7168
      %343 = vst.msk [vmem:[%s2] sm:$0xff] %vm342, %v338
      %344 = vst.msk [vmem:[%s2 + $0x8] sm:$0xff] %vm342, %v339
      %345 = vst.msk [vmem:[%s2 + $0x10] sm:$0xff] %vm342, %v340
      %346 = vst.msk [vmem:[%s2 + $0x18] sm:$0xff] %vm342, %v341
    $region25: #{tpu_custom_call.1} parent=1 // pred_fallthru
      _
    // Predicated region
    $region26: #{tpu_custom_call.1} parent=1 // pred_check
      _
    $region27: #{tpu_custom_call.1} parent=1 // pred_check_branch
      %348 = sbr.rel (0) target = $region29
    $region28: #{tpu_custom_call.1} parent=1 // pred_region
      _
    $region29: #{tpu_custom_call.1} parent=1 // pred_fallthru
      _
    // Predicated region
    $region30: #{tpu_custom_call.1} parent=1 // pred_check
      _
    $region31: #{tpu_custom_call.1} parent=1 // pred_check_branch
      %350 = sbr.rel (0) target = $region33
    $region32: #{tpu_custom_call.1} parent=1 // pred_region
      _
    $region33: #{tpu_custom_call.1} parent=1 // pred_fallthru
      _
    %351 = vsyncpa [#allocation6], 1
    %352 = vsyncpa [#allocation8], 1

</llo_original>
